<compile_context>
chip_gen: v7x
topology: tpu7x:2x2x1
jax: 0.10.0
libtpu: 0.0.40
codegen_flags: <defaults>
</compile_context>

<pallas_src>
import functools

import jax
import jax.numpy as jnp
from jax.experimental import pallas as pl
from jax.experimental.pallas import tpu as pltpu


def _qff_kernel(x_ref, w1_ref, b1_ref, w2_ref, b2_ref, mask_ref, o_ref, *,
                normalize_inputs):
    """One batch tile of the forward pass.

    x_ref   : (TB, F)  f32   flattened inputs (batch tile)
    w1_ref  : (F, H)   bf16,  b1_ref: (1, H)  f32
    w2_ref  : (H, O)   bf16,  b2_ref: (1, O)  f32   with O = S * V
    mask_ref: (O, O)   bf16   block-diagonal ones (same length-V segment)
    o_ref   : (TB, O)  f32    lane-dense softmax result (reshaped outside)
    """
    x = x_ref[...]
    if normalize_inputs:
        # torch.nn.functional.normalize over the flattened feature vector:
        # x / max(||x||_2, eps)  ==  x * rsqrt(max(||x||^2, eps^2)).
        # rsqrt lands on the EUP slot instead of a VALU sqrt + divide.
        ss = jnp.sum(x * x, axis=-1, keepdims=True)
        x = x * jax.lax.rsqrt(jnp.maximum(ss, 1e-24))

    # Layer 1 (MXU, bf16 operands, f32 accumulate) + bounded nonlinearity (EUP).
    h = jnp.tanh(
        jnp.dot(x.astype(jnp.bfloat16), w1_ref[...],
                preferred_element_type=jnp.float32) + b1_ref[...])
    # Layer 2 (MXU) -> per-sample "quantum output" of size O = S*V.
    z = jnp.dot(h.astype(jnp.bfloat16), w2_ref[...],
                preferred_element_type=jnp.float32) + b2_ref[...]

    # Softmax over each length-V segment of the lane axis, fully lane-dense:
    #   - one row-wide max (shift-invariant per segment),
    #   - floor at -80 so a segment far below the row max cannot have all of
    #     its exps underflow to 0 (keeps the reciprocal finite),
    #   - one streamed exp over the full rows (EUP),
    #   - segment sums broadcast via ONE block-diagonal ones matmul (MXU),
    #   - one approx reciprocal (EUP) + one full-width multiply + one
    #     unmasked lane-dense store.
    m = jnp.max(z, axis=-1, keepdims=True)
    e = jnp.exp(jnp.maximum(z - m, -80.0))
    sums_bcast = jnp.dot(e.astype(jnp.bfloat16), mask_ref[...],
                         preferred_element_type=jnp.float32)
    o_ref[...] = e * pl.reciprocal(sums_bcast, approx=True)


def quantum_feed_forward(x, params, *, sequence_length, vocab_size,
                         normalize_inputs=True):
    """Forward pass of QuantumFeedForward(task_type='generation')."""
    w1, b1, w2, b2 = params
    B = x.shape[0]
    x_flat = x.reshape(B, -1).astype(jnp.float32)            # glue reshape
    F = x_flat.shape[1]
    H = w1.shape[1]
    O = sequence_length * vocab_size
    assert w2.shape[1] == O, "output_size must equal sequence_length * vocab_size"

    # Ship matmul operands as bf16 (halves weight DMA); biases stay f32.
    w1b = w1.astype(jnp.bfloat16)
    w2b = w2.astype(jnp.bfloat16)
    b1f = b1.astype(jnp.float32).reshape(1, H)
    b2f = b2.astype(jnp.float32).reshape(1, O)

    # Block-diagonal ones mask: seg_mask[i, j] = (i // V == j // V).
    # Built once on the host side; constant index_map keeps it VMEM-resident.
    seg = jnp.arange(O, dtype=jnp.int32) // vocab_size
    seg_mask = (seg[:, None] == seg[None, :]).astype(jnp.bfloat16)   # (O, O)

    # Ragged-safe batch tiling: pad to a multiple of 8 sublanes, tiles of up
    # to 512 rows, and prefer >=2 grid steps when the batch permits so
    # ("parallel",) can split tiles across TensorCores on v7x.
    def _round_up(n, m):
        return ((n + m - 1) // m) * m

    B_pad = _round_up(B, 8)
    tb = min(B_pad, 512)
    if B_pad >= 16:
        tb = min(tb, _round_up(pl.cdiv(B_pad, 2), 8))
    B_pad = _round_up(B_pad, tb)
    grid = (B_pad // tb,)
    x_p = jnp.pad(x_flat, ((0, B_pad - B), (0, 0))) if B_pad != B else x_flat

    cost = pl.CostEstimate(
        flops=2 * B_pad * (F * H + H * O + O * O),
        transcendentals=B_pad * (1 + H + 2 * O),              # rsqrt+tanh+exp+recip
        bytes_accessed=(x_p.size * 4 + w1b.size * 2 + w2b.size * 2
                        + seg_mask.size * 2 + b1f.size * 4 + b2f.size * 4
                        + B_pad * O * 4),
    )

    out = pl.pallas_call(
        functools.partial(_qff_kernel, normalize_inputs=normalize_inputs),
        out_shape=jax.ShapeDtypeStruct((B_pad, O), jnp.float32),
        grid=grid,
        in_specs=[
            pl.BlockSpec((tb, F), lambda i: (i, 0)),          # x tile, pipelined
            pl.BlockSpec((F, H), lambda i: (0, 0)),           # weights stay resident
            pl.BlockSpec((1, H), lambda i: (0, 0)),
            pl.BlockSpec((H, O), lambda i: (0, 0)),
            pl.BlockSpec((1, O), lambda i: (0, 0)),
            pl.BlockSpec((O, O), lambda i: (0, 0)),           # segment mask, resident
        ],
        out_specs=pl.BlockSpec((tb, O), lambda i: (i, 0)),    # lane-dense output
        compiler_params=pltpu.CompilerParams(
            dimension_semantics=("parallel",)),
        cost_estimate=cost,
    )(x_p, w1b, b1f, w2b, b2f, seg_mask)

    # Drop batch padding; free layout plumbing back to (B, S, V).
    return out[:B].reshape(B, sequence_length, vocab_size)


def init_params(key, in_features, hidden, output_size,
                active_sd=1e-4, passive_sd=0.1, gain=1.0):
    """Deterministic 'normal' init mirroring (init_method='normal',
    active_sd, passive_sd, gain) of the quantum network weights."""
    k1, k2, k3, k4 = jax.random.split(key, 4)
    w1 = gain * passive_sd * jax.random.normal(k1, (in_features, hidden), jnp.float32)
    b1 = gain * active_sd * jax.random.normal(k2, (1, hidden), jnp.float32)
    w2 = gain * passive_sd * jax.random.normal(k3, (hidden, output_size), jnp.float32)
    b2 = gain * active_sd * jax.random.normal(k4, (1, output_size), jnp.float32)
    return w1, b1, w2, b2


if __name__ == "__main__":
    # Small shapes consistent with task_type='generation':
    #   batch=2, sequence_length=8, embedding=16, vocab_size=32.
    B, S, E, V = 2, 8, 16, 32
    # determine_qnn_parameters surrogate: num_wires=4, cutoff_dim=4 ->
    # Fock dimension 4**4 = 256 = output_size = S * V.
    output_size = S * V
    in_features = S * E
    hidden = 128

    key = jax.random.PRNGKey(0)
    kx, kp = jax.random.split(key)
    x = jax.random.normal(kx, (B, S, E), jnp.float32)
    params = init_params(kp, in_features, hidden, output_size)

    out = quantum_feed_forward(
        x, params, sequence_length=S, vocab_size=V, normalize_inputs=True)
    out = jax.block_until_ready(out)

    assert out.shape == (B, S, V)
    assert bool(jnp.all(jnp.isfinite(out)))
    # softmax rows sum to ~1 (bf16 segment sums + approx reciprocal -> relaxed tol)
    assert bool(jnp.allclose(jnp.sum(out, axis=-1), 1.0, atol=1e-2))
    assert bool(jnp.all(out >= 0.0))

    print("KERNEL_OK")
</pallas_src>

<mosaic_0001>
module attributes {stable_mosaic.version = 11 : i64} {
  func.func @_qff_kernel(%arg0: i32, %arg1: memref<8x128xf32, #tpu.memory_space<vmem>>, %arg2: memref<128x128xbf16, #tpu.memory_space<vmem>>, %arg3: memref<1x128xf32, #tpu.memory_space<vmem>>, %arg4: memref<128x256xbf16, #tpu.memory_space<vmem>>, %arg5: memref<1x256xf32, #tpu.memory_space<vmem>>, %arg6: memref<256x256xbf16, #tpu.memory_space<vmem>>, %arg7: memref<8x256xf32, #tpu.memory_space<vmem>>) attributes {dimension_semantics = [#tpu.dimension_semantics<parallel>], iteration_bounds = array<i64: 1>, scalar_prefetch = 0 : i64, scratch_operands = 0 : i64, tpu.core_type = #tpu.core_type<tc>, window_params = [{transform_indices = @transform_0, window_bounds = array<i64: 8, 128>}, {pipeline_mode = #tpu.pipeline_mode<synchronous>, transform_indices = @transform_1, window_bounds = array<i64: 128, 128>}, {pipeline_mode = #tpu.pipeline_mode<synchronous>, transform_indices = @transform_2, window_bounds = array<i64: 1, 128>}, {pipeline_mode = #tpu.pipeline_mode<synchronous>, transform_indices = @transform_3, window_bounds = array<i64: 128, 256>}, {pipeline_mode = #tpu.pipeline_mode<synchronous>, transform_indices = @transform_4, window_bounds = array<i64: 1, 256>}, {pipeline_mode = #tpu.pipeline_mode<synchronous>, transform_indices = @transform_5, window_bounds = array<i64: 256, 256>}, {transform_indices = @transform_6, window_bounds = array<i64: 8, 256>}]} {
    %c0 = arith.constant 0 : index
    %c0_0 = arith.constant 0 : index
    %0 = vector.load %arg1[%c0, %c0_0] : memref<8x128xf32, #tpu.memory_space<vmem>>, vector<8x128xf32>
    %1 = arith.mulf %0, %0 : vector<8x128xf32>
    %cst = arith.constant dense<0.000000e+00> : vector<8xf32>
    %2 = vector.multi_reduction <add>, %1, %cst [1] : vector<8x128xf32> to vector<8xf32>
    %3 = vector.shape_cast %2 : vector<8xf32> to vector<8x1xf32>
    %cst_1 = arith.constant 1.000000e-24 : f32
    %4 = vector.broadcast %cst_1 : f32 to vector<8x1xf32>
    %5 = arith.maximumf %3, %4 : vector<8x1xf32>
    %6 = math.rsqrt %5 : vector<8x1xf32>
    %7 = vector.broadcast %6 : vector<8x1xf32> to vector<8x128xf32>
    %8 = arith.mulf %0, %7 : vector<8x128xf32>
    %9 = arith.truncf %8 : vector<8x128xf32> to vector<8x128xbf16>
    %c0_2 = arith.constant 0 : index
    %c0_3 = arith.constant 0 : index
    %10 = vector.load %arg2[%c0_2, %c0_3] : memref<128x128xbf16, #tpu.memory_space<vmem>>, vector<128x128xbf16>
    %cst_4 = arith.constant dense<0.000000e+00> : vector<8x128xf32>
    %11 = tpu.matmul %9, %10, %cst_4 {dimension_numbers = #tpu.dot_dimension_numbers<[1], [0], [0], [1], [0, 0, 1, 1], [], []>} : vector<8x128xbf16>, vector<128x128xbf16>, vector<8x128xf32> -> vector<8x128xf32>
    %c0_5 = arith.constant 0 : index
    %c0_6 = arith.constant 0 : index
    %12 = vector.load %arg3[%c0_5, %c0_6] : memref<1x128xf32, #tpu.memory_space<vmem>>, vector<1x128xf32>
    %13 = vector.broadcast %12 : vector<1x128xf32> to vector<8x128xf32>
    %14 = arith.addf %11, %13 : vector<8x128xf32>
    %15 = math.tanh %14 : vector<8x128xf32>
    %16 = arith.truncf %15 : vector<8x128xf32> to vector<8x128xbf16>
    %c0_7 = arith.constant 0 : index
    %c0_8 = arith.constant 0 : index
    %17 = vector.load %arg4[%c0_7, %c0_8] : memref<128x256xbf16, #tpu.memory_space<vmem>>, vector<128x256xbf16>
    %cst_9 = arith.constant dense<0.000000e+00> : vector<8x256xf32>
    %18 = tpu.matmul %16, %17, %cst_9 {dimension_numbers = #tpu.dot_dimension_numbers<[1], [0], [0], [1], [0, 0, 1, 1], [], []>} : vector<8x128xbf16>, vector<128x256xbf16>, vector<8x256xf32> -> vector<8x256xf32>
    %c0_10 = arith.constant 0 : index
    %c0_11 = arith.constant 0 : index
    %19 = vector.load %arg5[%c0_10, %c0_11] : memref<1x256xf32, #tpu.memory_space<vmem>>, vector<1x256xf32>
    %20 = vector.broadcast %19 : vector<1x256xf32> to vector<8x256xf32>
    %21 = arith.addf %18, %20 : vector<8x256xf32>
    %cst_12 = arith.constant dense<0xFF800000> : vector<8xf32>
    %22 = vector.multi_reduction <maximumf>, %21, %cst_12 [1] : vector<8x256xf32> to vector<8xf32>
    %23 = vector.shape_cast %22 : vector<8xf32> to vector<8x1xf32>
    %24 = vector.broadcast %23 : vector<8x1xf32> to vector<8x256xf32>
    %25 = arith.subf %21, %24 : vector<8x256xf32>
    %cst_13 = arith.constant -8.000000e+01 : f32
    %26 = vector.broadcast %cst_13 : f32 to vector<8x256xf32>
    %27 = arith.maximumf %25, %26 : vector<8x256xf32>
    %28 = math.exp %27 : vector<8x256xf32>
    %29 = arith.truncf %28 : vector<8x256xf32> to vector<8x256xbf16>
    %c0_14 = arith.constant 0 : index
    %c0_15 = arith.constant 0 : index
    %30 = vector.load %arg6[%c0_14, %c0_15] : memref<256x256xbf16, #tpu.memory_space<vmem>>, vector<256x256xbf16>
    %cst_16 = arith.constant dense<0.000000e+00> : vector<8x256xf32>
    %31 = tpu.matmul %29, %30, %cst_16 {dimension_numbers = #tpu.dot_dimension_numbers<[1], [0], [0], [1], [0, 0, 1, 1], [], []>} : vector<8x256xbf16>, vector<256x256xbf16>, vector<8x256xf32> -> vector<8x256xf32>
    %32 = tpu.reciprocal %31 {approx = true} : vector<8x256xf32> -> vector<8x256xf32>
    %33 = arith.mulf %28, %32 : vector<8x256xf32>
    %c0_17 = arith.constant 0 : index
    %c0_18 = arith.constant 0 : index
    %34 = vector.load %arg7[%c0_17, %c0_18] : memref<8x256xf32, #tpu.memory_space<vmem>>, vector<8x256xf32>
    tpu.vector_store %arg7[%c0_17, %c0_18], %33 {strides = array<i32>} : memref<8x256xf32, #tpu.memory_space<vmem>>, vector<8x256xf32>,
    return
  }
  func.func @transform_0(%arg0: i32) -> (i32, i32) {
    %c0_i32 = arith.constant 0 : i32
    %c0_i32_0 = arith.constant 0 : i32
    return %arg0, %c0_i32 : i32, i32
  }
  func.func @transform_1(%arg0: i32) -> (i32, i32) {
    %c0_i32 = arith.constant 0 : i32
    %c0_i32_0 = arith.constant 0 : i32
    %c0_i32_1 = arith.constant 0 : i32
    return %c0_i32, %c0_i32_0 : i32, i32
  }
  func.func @transform_2(%arg0: i32) -> (i32, i32) {
    %c0_i32 = arith.constant 0 : i32
    %c0_i32_0 = arith.constant 0 : i32
    %c0_i32_1 = arith.constant 0 : i32
    return %c0_i32, %c0_i32_0 : i32, i32
  }
  func.func @transform_3(%arg0: i32) -> (i32, i32) {
    %c0_i32 = arith.constant 0 : i32
    %c0_i32_0 = arith.constant 0 : i32
    %c0_i32_1 = arith.constant 0 : i32
    return %c0_i32, %c0_i32_0 : i32, i32
  }
  func.func @transform_4(%arg0: i32) -> (i32, i32) {
    %c0_i32 = arith.constant 0 : i32
    %c0_i32_0 = arith.constant 0 : i32
    %c0_i32_1 = arith.constant 0 : i32
    return %c0_i32, %c0_i32_0 : i32, i32
  }
  func.func @transform_5(%arg0: i32) -> (i32, i32) {
    %c0_i32 = arith.constant 0 : i32
    %c0_i32_0 = arith.constant 0 : i32
    %c0_i32_1 = arith.constant 0 : i32
    return %c0_i32, %c0_i32_0 : i32, i32
  }
  func.func @transform_6(%arg0: i32) -> (i32, i32) {
    %c0_i32 = arith.constant 0 : i32
    %c0_i32_0 = arith.constant 0 : i32
    return %arg0, %c0_i32 : i32, i32
  }
}

</mosaic_0001>

<llo_original>
// kernel: tpu_custom_call.1
$region0: #{tpu_custom_call.1}
  #allocation0 [shape = 'u32[]', space=smem, size = 0x4, offset = 0x4, fixed_abs, tag = 'smem constant byte address 0x4 - core index']
  #allocation1 [shape = 'u32[144,128]{1,0:T(1,128)}', space=vmem, size = 0x12000, scoped, tag = 'internal scratch']
  %s0 = inlined_call_operand.hbm [shape: f32[8,128], index: 0, kind: input, shape index: {}]
  %s1 = inlined_call_operand.hbm [shape: bf16[128,128], index: 1, kind: input, shape index: {}]
  %s2 = inlined_call_operand.vmem [shape: f32[1,128], index: 2, kind: input, shape index: {}]
  %s3 = inlined_call_operand.hbm [shape: bf16[128,256], index: 3, kind: input, shape index: {}]
  %s4 = inlined_call_operand.vmem [shape: f32[1,256], index: 4, kind: input, shape index: {}]
  %s5 = inlined_call_operand.hbm [shape: bf16[256,256], index: 5, kind: input, shape index: {}]
  %s6 = inlined_call_operand.hbm [shape: f32[8,256], index: 6, kind: output, shape index: {}]
  %s7 = sld [smem:[#allocation0]]
  $region50: #{tpu_custom_call.1} parent=0
    _
  %s9 = ssub.s32 1, %s7
  %s10 = scalar_select 0, %s9, %s7
  $region1: #{tpu_custom_call.1} parent=0
    #allocation2 [shape = 'u8[4096]{0}', space=vmem, size = 0x1000, scoped, tag = 'input window, operand 0, single buffered']
    #allocation3 [shape = 's32[1]{0}', space=sflag, size = 0x4, scoped, tag = 'scoped memory for tpu_custom_call.1']
    #allocation4 [shape = 's32[1]{0}', space=sflag, size = 0x4, scoped, tag = 'scoped memory for tpu_custom_call.1']
    #allocation5 [shape = 'u8[32768]{0}', space=vmem, size = 0x8000, scoped, tag = 'input window, operand 1, single buffered']
    #allocation6 [shape = 's32[1]{0}', space=sflag, size = 0x4, scoped, tag = 'scoped memory for tpu_custom_call.1']
    #allocation7 [shape = 'u8[65536]{0}', space=vmem, size = 0x10000, scoped, tag = 'input window, operand 3, single buffered']
    #allocation8 [shape = 'u8[131072]{0}', space=vmem, size = 0x20000, scoped, tag = 'input window, operand 5, single buffered']
    #allocation9 [shape = 's32[1]{0}', space=sflag, size = 0x4, scoped, tag = 'scoped memory for tpu_custom_call.1']
    #allocation10 [shape = 'u8[8192]{0}', space=vmem, size = 0x2000, scoped, tag = 'output window, operand 0, single buffered']
    %11 = vsyncpa [#allocation3], 0
    %12 = vsyncpa [#allocation6], 0
    %13 = vsyncpa [#allocation9], 0
    %14 = vsyncpa [#allocation4], 0
    // Predicated region
    $region2: #{tpu_custom_call.1} parent=1 // pred_check
      _
    $region3: #{tpu_custom_call.1} parent=1 // pred_check_branch
      %16 = sbr.rel (0) target = $region5
    $region4: #{tpu_custom_call.1} parent=1 // pred_region
      %s18 = ssub.s32 128, 128
      %19 = vsyncadd [#allocation3], %s18
      %s21 = sshll.u32 [#allocation2], 4
      %s22 = int_to_ptr.vmem [resolvable:$true] %s21
      %24 = dma.hbm_to_vmem [thread:$0]  %s0, 128, %s22, [#allocation3]
    $region5: #{tpu_custom_call.1} parent=1 // pred_fallthru
      _
    // Predicated region
    $region6: #{tpu_custom_call.1} parent=1 // pred_check
      _
    $region7: #{tpu_custom_call.1} parent=1 // pred_check_branch
      %26 = sbr.rel (0) target = $region9
    $region8: #{tpu_custom_call.1} parent=1 // pred_region
      %s28 = ssub.s32 1024, 1024
      %29 = vsyncadd [#allocation6], %s28
      %s30 = sshll.u32 [#allocation5], 4
      %s31 = int_to_ptr.vmem [resolvable:$true] %s30
      %36 = dma.hbm_to_vmem [thread:$0]  %s1, 1024, %s31, [#allocation6], 64, 64, 4
    $region9: #{tpu_custom_call.1} parent=1 // pred_fallthru
      _
    // Predicated region
    $region10: #{tpu_custom_call.1} parent=1 // pred_check
      _
    $region11: #{tpu_custom_call.1} parent=1 // pred_check_branch
      %38 = sbr.rel (0) target = $region13
    $region12: #{tpu_custom_call.1} parent=1 // pred_region
      _
    $region13: #{tpu_custom_call.1} parent=1 // pred_fallthru
      _
    // Predicated region
    $region14: #{tpu_custom_call.1} parent=1 // pred_check
      _
    $region15: #{tpu_custom_call.1} parent=1 // pred_check_branch
      %40 = sbr.rel (0) target = $region17
    $region16: #{tpu_custom_call.1} parent=1 // pred_region
      %s42 = ssub.s32 2048, 2048
      %43 = vsyncadd [#allocation6], %s42
      %s44 = sshll.u32 [#allocation7], 4
      %s45 = int_to_ptr.vmem [resolvable:$true] %s44
      %50 = dma.hbm_to_vmem [thread:$0]  %s3, 2048, %s45, [#allocation6], 128, 128, 8
    $region17: #{tpu_custom_call.1} parent=1 // pred_fallthru
      _
    // Predicated region
    $region18: #{tpu_custom_call.1} parent=1 // pred_check
      _
    $region19: #{tpu_custom_call.1} parent=1 // pred_check_branch
      %52 = sbr.rel (0) target = $region21
    $region20: #{tpu_custom_call.1} parent=1 // pred_region
      _
    $region21: #{tpu_custom_call.1} parent=1 // pred_fallthru
      _
    // Predicated region
    $region22: #{tpu_custom_call.1} parent=1 // pred_check
      _
    $region23: #{tpu_custom_call.1} parent=1 // pred_check_branch
      %54 = sbr.rel (0) target = $region25
    $region24: #{tpu_custom_call.1} parent=1 // pred_region
      %s56 = ssub.s32 4096, 4096
      %57 = vsyncadd [#allocation9], %s56
      %s58 = sshll.u32 [#allocation8], 4
      %s59 = int_to_ptr.vmem [resolvable:$true] %s58
      %64 = dma.hbm_to_vmem [thread:$0]  %s5, 4096, %s59, [#allocation9], 128, 128, 8
    $region25: #{tpu_custom_call.1} parent=1 // pred_fallthru
      _
    // Predicated region
    $region26: #{tpu_custom_call.1} parent=1 // pred_check
      _
    $region27: #{tpu_custom_call.1} parent=1 // pred_check_branch
      %66 = sbr.rel (0) target = $region29
    $region28: #{tpu_custom_call.1} parent=1 // pred_region
      %67 = dma.done [#allocation3], 128
    $region29: #{tpu_custom_call.1} parent=1 // pred_fallthru
      _
    // Predicated region
    $region30: #{tpu_custom_call.1} parent=1 // pred_check
      _
    $region31: #{tpu_custom_call.1} parent=1 // pred_check_branch
      %69 = sbr.rel (0) target = $region33
    $region32: #{tpu_custom_call.1} parent=1 // pred_region
      %70 = dma.done [#allocation6], 1024
    $region33: #{tpu_custom_call.1} parent=1 // pred_fallthru
      _
    // Predicated region
    $region34: #{tpu_custom_call.1} parent=1 // pred_check
      _
    $region35: #{tpu_custom_call.1} parent=1 // pred_check_branch
      %72 = sbr.rel (0) target = $region37
    $region36: #{tpu_custom_call.1} parent=1 // pred_region
      %73 = dma.done [#allocation6], 2048
    $region37: #{tpu_custom_call.1} parent=1 // pred_fallthru
      _
    // Predicated region
    $region38: #{tpu_custom_call.1} parent=1 // pred_check
      _
    $region39: #{tpu_custom_call.1} parent=1 // pred_check_branch
      %75 = sbr.rel (0) target = $region41
    $region40: #{tpu_custom_call.1} parent=1 // pred_region
      %76 = dma.done [#allocation9], 4096
    $region41: #{tpu_custom_call.1} parent=1 // pred_fallthru
      _
    %v78 = vld [vmem:[#allocation2] sm:$0xff]
    %v79 = vmul.f32 %v78, %v78
    %80 = vadd.xlane.f32.xlu0 %v79
    %v81 = vpop.xlane.xlu0 %80
    %v82 = vmax.f32 %v81, 1e-24
    %v83 = vrsqrt.pop %v82
    %v84 = vmul.f32 %v78, %v83
    %v85 = vpack.c.bf16 %v84, %v84
    %v86 = vld [vmem:[#allocation5] sm:$0xf]
    %v87 = vld [vmem:[#allocation5 + $0x4] sm:$0xf]
    %v88 = vld [vmem:[#allocation5 + $0x8] sm:$0xf]
    %v89 = vld [vmem:[#allocation5 + $0xc] sm:$0xf]
    %v90 = vld [vmem:[#allocation5 + $0x10] sm:$0xf]
    %v91 = vld [vmem:[#allocation5 + $0x14] sm:$0xf]
    %v92 = vld [vmem:[#allocation5 + $0x18] sm:$0xf]
    %v93 = vld [vmem:[#allocation5 + $0x1c] sm:$0xf]
    %v94 = vld [vmem:[#allocation5 + $0x20] sm:$0xf]
    %v95 = vld [vmem:[#allocation5 + $0x24] sm:$0xf]
    %v96 = vld [vmem:[#allocation5 + $0x28] sm:$0xf]
    %v97 = vld [vmem:[#allocation5 + $0x2c] sm:$0xf]
    %v98 = vld [vmem:[#allocation5 + $0x30] sm:$0xf]
    %v99 = vld [vmem:[#allocation5 + $0x34] sm:$0xf]
    %v100 = vld [vmem:[#allocation5 + $0x38] sm:$0xf]
    %v101 = vld [vmem:[#allocation5 + $0x3c] sm:$0xf]
    %v102 = vld [vmem:[%s2] sm:$0x1]
    %v104 = vlaneseq
    %v105 = vshrl.u32 %v104, 7
    %v106 = vsub.s32 0, %v105
    %v107 = vrot.slane %v102, %v106
    %v125 = vunpack.c.l.b16 %v86
    %v126 = vunpack.c.l.b16 %v87
    %v127 = vunpack.c.l.b16 %v88
    %v128 = vunpack.c.l.b16 %v89
    %v129 = vunpack.c.l.b16 %v90
    %v130 = vunpack.c.l.b16 %v91
    %v131 = vunpack.c.l.b16 %v92
    %v132 = vunpack.c.l.b16 %v93
    %v133 = vunpack.c.l.b16 %v94
    %v134 = vunpack.c.l.b16 %v95
    %v135 = vunpack.c.l.b16 %v96
    %v136 = vunpack.c.l.b16 %v97
    %v137 = vunpack.c.l.b16 %v98
    %v138 = vunpack.c.l.b16 %v99
    %v139 = vunpack.c.l.b16 %v100
    %v140 = vunpack.c.l.b16 %v101
    %v141 = vpack.c.b16 %v126, %v125
    %v142 = vpack.c.b16 %v128, %v127
    %v143 = vpack.c.b16 %v130, %v129
    %v144 = vpack.c.b16 %v132, %v131
    %v145 = vpack.c.b16 %v134, %v133
    %v146 = vpack.c.b16 %v136, %v135
    %v147 = vpack.c.b16 %v138, %v137
    %v148 = vpack.c.b16 %v140, %v139
    %157 = vmatprep.subr.bf16.mxu0 0
    %158 = vmatpush1.bf16.msra.mxu0 %v141
    %159 = vmatprep.subr.bf16.mxu0 0
    %160 = vmatpush1.bf16.msra.mxu0 %v142
    %161 = vmatprep.subr.bf16.mxu0 0
    %162 = vmatpush1.bf16.msra.mxu0 %v143
    %163 = vmatprep.subr.bf16.mxu0 0
    %164 = vmatpush1.bf16.msra.mxu0 %v144
    %165 = vmatprep.subr.bf16.mxu0 0
    %166 = vmatpush1.bf16.msra.mxu0 %v145
    %167 = vmatprep.subr.bf16.mxu0 0
    %168 = vmatpush1.bf16.msra.mxu0 %v146
    %169 = vmatprep.subr.bf16.mxu0 0
    %170 = vmatpush1.bf16.msra.mxu0 %v147
    %171 = vmatprep.subr.bf16.mxu0 0
    %172 = vmatpush1.bf16.msra.mxu0 %v148
    %173 = vmatprep.subr.bf16.mxu0 0
    %174 = vmatpush1.bf16.msra.mxu0 0
    %175 = vmatprep.subr.bf16.mxu0 0
    %176 = vmatpush1.bf16.msra.mxu0 0
    %177 = vmatprep.subr.bf16.mxu0 0
    %178 = vmatpush1.bf16.msra.mxu0 0
    %179 = vmatprep.subr.bf16.mxu0 0
    %180 = vmatpush1.bf16.msra.mxu0 0
    %181 = vmatprep.subr.bf16.mxu0 0
    %182 = vmatpush1.bf16.msra.mxu0 0
    %183 = vmatprep.subr.bf16.mxu0 0
    %184 = vmatpush1.bf16.msra.mxu0 0
    %185 = vmatprep.subr.bf16.mxu0 0
    %186 = vmatpush1.bf16.msra.mxu0 0
    %187 = vmatprep.subr.bf16.mxu0 0
    %188 = vmatpush1.bf16.msra.mxu0 0
    %189 = vmatprep.mubr.bf16.mxu0 0
    %190 = vmatmul.mubr.bf16.gmra.mrb[0].mxu0 %v85
    %v191 = vpop.f32.mrb[0].mxu0
    %v192 = vadd.f32 %v107, %v191
    %v193 = vpop.f32.mrb[0].mxu0
    %v194 = vpop.f32.mrb[0].mxu0
    %v195 = vpop.f32.mrb[0].mxu0
    %196 = vdwg.mxu0
    %v197 = vtanh.pop %v192
    %v198 = vpack.c.bf16 %v197, %v197
    %v199 = vld [vmem:[#allocation7] sm:$0xff]
    %v200 = vld [vmem:[#allocation7 + $0x8] sm:$0xff]
    %v201 = vld [vmem:[#allocation7 + $0x10] sm:$0xff]
    %v202 = vld [vmem:[#allocation7 + $0x18] sm:$0xff]
    %v203 = vld [vmem:[#allocation7 + $0x20] sm:$0xff]
    %v204 = vld [vmem:[#allocation7 + $0x28] sm:$0xff]
    %v205 = vld [vmem:[#allocation7 + $0x30] sm:$0xff]
    %v206 = vld [vmem:[#allocation7 + $0x38] sm:$0xff]
    %v207 = vld [vmem:[#allocation7 + $0x40] sm:$0xff]
    %v208 = vld [vmem:[#allocation7 + $0x48] sm:$0xff]
    %v209 = vld [vmem:[#allocation7 + $0x50] sm:$0xff]
    %v210 = vld [vmem:[#allocation7 + $0x58] sm:$0xff]
    %v211 = vld [vmem:[#allocation7 + $0x60] sm:$0xff]
    %v212 = vld [vmem:[#allocation7 + $0x68] sm:$0xff]
    %v213 = vld [vmem:[#allocation7 + $0x70] sm:$0xff]
    %v214 = vld [vmem:[#allocation7 + $0x78] sm:$0xff]
    %v215 = vld [vmem:[%s4] sm:$0x3]
    %v217 = vlaneseq
    %v218 = vshrl.u32 %v217, 7
    %v219 = vsub.s32 0, %v218
    %v220 = vrot.slane %v215, %v219
    %v221 = vlaneseq
    %v222 = vshrl.u32 %v221, 7
    %v223 = vsub.s32 1, %v222
    %v224 = vrot.slane %v215, %v223
    %v243 = vunpack.c.l.b16 %v199
    %v244 = vunpack.c.h.b16 %v199
    %v245 = vunpack.c.l.b16 %v200
    %v246 = vunpack.c.h.b16 %v200
    %v247 = vunpack.c.l.b16 %v201
    %v248 = vunpack.c.h.b16 %v201
    %v249 = vunpack.c.l.b16 %v202
    %v250 = vunpack.c.h.b16 %v202
    %v251 = vunpack.c.l.b16 %v203
    %v252 = vunpack.c.h.b16 %v203
    %v253 = vunpack.c.l.b16 %v204
    %v254 = vunpack.c.h.b16 %v204
    %v255 = vunpack.c.l.b16 %v205
    %v256 = vunpack.c.h.b16 %v205
    %v257 = vunpack.c.l.b16 %v206
    %v258 = vunpack.c.h.b16 %v206
    %v259 = vunpack.c.l.b16 %v207
    %v260 = vunpack.c.h.b16 %v207
    %v261 = vunpack.c.l.b16 %v208
    %v262 = vunpack.c.h.b16 %v208
    %v263 = vunpack.c.l.b16 %v209
    %v264 = vunpack.c.h.b16 %v209
    %v265 = vunpack.c.l.b16 %v210
    %v266 = vunpack.c.h.b16 %v210
    %v267 = vunpack.c.l.b16 %v211
    %v268 = vunpack.c.h.b16 %v211
    %v269 = vunpack.c.l.b16 %v212
    %v270 = vunpack.c.h.b16 %v212
    %v271 = vunpack.c.l.b16 %v213
    %v272 = vunpack.c.h.b16 %v213
    %v273 = vunpack.c.l.b16 %v214
    %v274 = vunpack.c.h.b16 %v214
    %v275 = vpack.c.b16 %v245, %v243
    %v276 = vpack.c.b16 %v246, %v244
    %v277 = vpack.c.b16 %v249, %v247
    %v278 = vpack.c.b16 %v250, %v248
    %v279 = vpack.c.b16 %v253, %v251
    %v280 = vpack.c.b16 %v254, %v252
    %v281 = vpack.c.b16 %v257, %v255
    %v282 = vpack.c.b16 %v258, %v256
    %v283 = vpack.c.b16 %v261, %v259
    %v284 = vpack.c.b16 %v262, %v260
    %v285 = vpack.c.b16 %v265, %v263
    %v286 = vpack.c.b16 %v266, %v264
    %v287 = vpack.c.b16 %v269, %v267
    %v288 = vpack.c.b16 %v270, %v268
    %v289 = vpack.c.b16 %v273, %v271
    %v290 = vpack.c.b16 %v274, %v272
    %307 = vmatprep.subr.bf16.mxu0 %v276
    %308 = vmatpush1.bf16.msra.mxu0 %v275
    %309 = vmatprep.subr.bf16.mxu0 %v278
    %310 = vmatpush1.bf16.msra.mxu0 %v277
    %311 = vmatprep.subr.bf16.mxu0 %v280
    %312 = vmatpush1.bf16.msra.mxu0 %v279
    %313 = vmatprep.subr.bf16.mxu0 %v282
    %314 = vmatpush1.bf16.msra.mxu0 %v281
    %315 = vmatprep.subr.bf16.mxu0 %v284
    %316 = vmatpush1.bf16.msra.mxu0 %v283
    %317 = vmatprep.subr.bf16.mxu0 %v286
    %318 = vmatpush1.bf16.msra.mxu0 %v285
    %319 = vmatprep.subr.bf16.mxu0 %v288
    %320 = vmatpush1.bf16.msra.mxu0 %v287
    %321 = vmatprep.subr.bf16.mxu0 %v290
    %322 = vmatpush1.bf16.msra.mxu0 %v289
    %323 = vmatprep.subr.bf16.mxu0 0
    %324 = vmatpush1.bf16.msra.mxu0 0
    %325 = vmatprep.subr.bf16.mxu0 0
    %326 = vmatpush1.bf16.msra.mxu0 0
    %327 = vmatprep.subr.bf16.mxu0 0
    %328 = vmatpush1.bf16.msra.mxu0 0
    %329 = vmatprep.subr.bf16.mxu0 0
    %330 = vmatpush1.bf16.msra.mxu0 0
    %331 = vmatprep.subr.bf16.mxu0 0
    %332 = vmatpush1.bf16.msra.mxu0 0
    %333 = vmatprep.subr.bf16.mxu0 0
    %334 = vmatpush1.bf16.msra.mxu0 0
    %335 = vmatprep.subr.bf16.mxu0 0
    %336 = vmatpush1.bf16.msra.mxu0 0
    %337 = vmatprep.subr.bf16.mxu0 0
    %338 = vmatpush1.bf16.msra.mxu0 0
    %339 = vmatprep.mubr.bf16.mxu0 0
    %340 = vmatmul.mubr.bf16.gmra.mrb[0].mxu0 %v198
    %v341 = vpop.f32.mrb[0].mxu0
    %v342 = vadd.f32 %v220, %v341
    %v343 = vpop.f32.mrb[0].mxu0
    %v344 = vadd.f32 %v224, %v343
    %v345 = vpop.f32.mrb[0].mxu0
    %v346 = vpop.f32.mrb[0].mxu0
    %347 = vdwg.mxu0
    %v348 = vmax.f32 %v342, %v344
    %349 = vmax.xlane.f32.xlu0 %v348
    %v350 = vpop.xlane.xlu0 %349
    %v351 = vsub.f32 %v342, %v350
    %v352 = vsub.f32 %v344, %v350
    %v353 = vmax.f32 %v351, -80.0
    %v354 = vmax.f32 %v352, -80.0
    %v355 = vmul.f32 %v353, 1.442695
    %v356 = vpow.pop %v355
    %v357 = vmul.f32 %v354, 1.442695
    %v358 = vpow.pop %v357
    %v359 = vpack.c.bf16 %v356, %v356
    %v360 = vpack.c.bf16 %v358, %v358
    %v361 = vld [vmem:[#allocation8] sm:$0xff]
    %v362 = vld [vmem:[#allocation8 + $0x8] sm:$0xff]
    %v363 = vld [vmem:[#allocation8 + $0x10] sm:$0xff]
    %v364 = vld [vmem:[#allocation8 + $0x18] sm:$0xff]
    %v365 = vld [vmem:[#allocation8 + $0x20] sm:$0xff]
    %v366 = vld [vmem:[#allocation8 + $0x28] sm:$0xff]
    %v367 = vld [vmem:[#allocation8 + $0x30] sm:$0xff]
    %v368 = vld [vmem:[#allocation8 + $0x38] sm:$0xff]
    %v369 = vld [vmem:[#allocation8 + $0x40] sm:$0xff]
    %v370 = vld [vmem:[#allocation8 + $0x48] sm:$0xff]
    %v371 = vld [vmem:[#allocation8 + $0x50] sm:$0xff]
    %v372 = vld [vmem:[#allocation8 + $0x58] sm:$0xff]
    %v373 = vld [vmem:[#allocation8 + $0x60] sm:$0xff]
    %v374 = vld [vmem:[#allocation8 + $0x68] sm:$0xff]
    %v375 = vld [vmem:[#allocation8 + $0x70] sm:$0xff]
    %v376 = vld [vmem:[#allocation8 + $0x78] sm:$0xff]
    %v377 = vld [vmem:[#allocation8 + $0x80] sm:$0xff]
    %v378 = vld [vmem:[#allocation8 + $0x88] sm:$0xff]
    %v379 = vld [vmem:[#allocation8 + $0x90] sm:$0xff]
    %v380 = vld [vmem:[#allocation8 + $0x98] sm:$0xff]
    %v381 = vld [vmem:[#allocation8 + $0xa0] sm:$0xff]
    %v382 = vld [vmem:[#allocation8 + $0xa8] sm:$0xff]
    %v383 = vld [vmem:[#allocation8 + $0xb0] sm:$0xff]
    %v384 = vld [vmem:[#allocation8 + $0xb8] sm:$0xff]
    %v385 = vld [vmem:[#allocation8 + $0xc0] sm:$0xff]
    %v386 = vld [vmem:[#allocation8 + $0xc8] sm:$0xff]
    %v387 = vld [vmem:[#allocation8 + $0xd0] sm:$0xff]
    %v388 = vld [vmem:[#allocation8 + $0xd8] sm:$0xff]
    %v389 = vld [vmem:[#allocation8 + $0xe0] sm:$0xff]
    %v390 = vld [vmem:[#allocation8 + $0xe8] sm:$0xff]
    %v391 = vld [vmem:[#allocation8 + $0xf0] sm:$0xff]
    %v392 = vld [vmem:[#allocation8 + $0xf8] sm:$0xff]
    %v425 = vunpack.c.l.b16 %v361
    %v426 = vunpack.c.h.b16 %v361
    %v427 = vunpack.c.l.b16 %v362
    %v428 = vunpack.c.h.b16 %v362
    %v429 = vunpack.c.l.b16 %v363
    %v430 = vunpack.c.h.b16 %v363
    %v431 = vunpack.c.l.b16 %v364
    %v432 = vunpack.c.h.b16 %v364
    %v433 = vunpack.c.l.b16 %v365
    %v434 = vunpack.c.h.b16 %v365
    %v435 = vunpack.c.l.b16 %v366
    %v436 = vunpack.c.h.b16 %v366
    %v437 = vunpack.c.l.b16 %v367
    %v438 = vunpack.c.h.b16 %v367
    %v439 = vunpack.c.l.b16 %v368
    %v440 = vunpack.c.h.b16 %v368
    %v441 = vunpack.c.l.b16 %v369
    %v442 = vunpack.c.h.b16 %v369
    %v443 = vunpack.c.l.b16 %v370
    %v444 = vunpack.c.h.b16 %v370
    %v445 = vunpack.c.l.b16 %v371
    %v446 = vunpack.c.h.b16 %v371
    %v447 = vunpack.c.l.b16 %v372
    %v448 = vunpack.c.h.b16 %v372
    %v449 = vunpack.c.l.b16 %v373
    %v450 = vunpack.c.h.b16 %v373
    %v451 = vunpack.c.l.b16 %v374
    %v452 = vunpack.c.h.b16 %v374
    %v453 = vunpack.c.l.b16 %v375
    %v454 = vunpack.c.h.b16 %v375
    %v455 = vunpack.c.l.b16 %v376
    %v456 = vunpack.c.h.b16 %v376
    %v457 = vunpack.c.l.b16 %v377
    %v458 = vunpack.c.h.b16 %v377
    %v459 = vunpack.c.l.b16 %v378
    %v460 = vunpack.c.h.b16 %v378
    %v461 = vunpack.c.l.b16 %v379
    %v462 = vunpack.c.h.b16 %v379
    %v463 = vunpack.c.l.b16 %v380
    %v464 = vunpack.c.h.b16 %v380
    %v465 = vunpack.c.l.b16 %v381
    %v466 = vunpack.c.h.b16 %v381
    %v467 = vunpack.c.l.b16 %v382
    %v468 = vunpack.c.h.b16 %v382
    %v469 = vunpack.c.l.b16 %v383
    %v470 = vunpack.c.h.b16 %v383
    %v471 = vunpack.c.l.b16 %v384
    %v472 = vunpack.c.h.b16 %v384
    %v473 = vunpack.c.l.b16 %v385
    %v474 = vunpack.c.h.b16 %v385
    %v475 = vunpack.c.l.b16 %v386
    %v476 = vunpack.c.h.b16 %v386
    %v477 = vunpack.c.l.b16 %v387
    %v478 = vunpack.c.h.b16 %v387
    %v479 = vunpack.c.l.b16 %v388
    %v480 = vunpack.c.h.b16 %v388
    %v481 = vunpack.c.l.b16 %v389
    %v482 = vunpack.c.h.b16 %v389
    %v483 = vunpack.c.l.b16 %v390
    %v484 = vunpack.c.h.b16 %v390
    %v485 = vunpack.c.l.b16 %v391
    %v486 = vunpack.c.h.b16 %v391
    %v487 = vunpack.c.l.b16 %v392
    %v488 = vunpack.c.h.b16 %v392
    %v489 = vpack.c.b16 %v427, %v425
    %v490 = vpack.c.b16 %v428, %v426
    %v491 = vpack.c.b16 %v431, %v429
    %v492 = vpack.c.b16 %v432, %v430
    %v493 = vpack.c.b16 %v435, %v433
    %v494 = vpack.c.b16 %v436, %v434
    %v495 = vpack.c.b16 %v439, %v437
    %v496 = vpack.c.b16 %v440, %v438
    %v497 = vpack.c.b16 %v443, %v441
    %v498 = vpack.c.b16 %v444, %v442
    %v499 = vpack.c.b16 %v447, %v445
    %v500 = vpack.c.b16 %v448, %v446
    %v501 = vpack.c.b16 %v451, %v449
    %v502 = vpack.c.b16 %v452, %v450
    %v503 = vpack.c.b16 %v455, %v453
    %v504 = vpack.c.b16 %v456, %v454
    %v505 = vpack.c.b16 %v459, %v457
    %v506 = vpack.c.b16 %v460, %v458
    %v507 = vpack.c.b16 %v463, %v461
    %v508 = vpack.c.b16 %v464, %v462
    %v509 = vpack.c.b16 %v467, %v465
    %v510 = vpack.c.b16 %v468, %v466
    %v511 = vpack.c.b16 %v471, %v469
    %v512 = vpack.c.b16 %v472, %v470
    %v513 = vpack.c.b16 %v475, %v473
    %v514 = vpack.c.b16 %v476, %v474
    %v515 = vpack.c.b16 %v479, %v477
    %v516 = vpack.c.b16 %v480, %v478
    %v517 = vpack.c.b16 %v483, %v481
    %v518 = vpack.c.b16 %v484, %v482
    %v519 = vpack.c.b16 %v487, %v485
    %v520 = vpack.c.b16 %v488, %v486
    %553 = vmatprep.subr.bf16.mxu0 %v490
    %554 = vmatpush1.bf16.msra.mxu0 %v489
    %555 = vmatprep.subr.bf16.mxu0 %v492
    %556 = vmatpush1.bf16.msra.mxu0 %v491
    %557 = vmatprep.subr.bf16.mxu0 %v494
    %558 = vmatpush1.bf16.msra.mxu0 %v493
    %559 = vmatprep.subr.bf16.mxu0 %v496
    %560 = vmatpush1.bf16.msra.mxu0 %v495
    %561 = vmatprep.subr.bf16.mxu0 %v498
    %562 = vmatpush1.bf16.msra.mxu0 %v497
    %563 = vmatprep.subr.bf16.mxu0 %v500
    %564 = vmatpush1.bf16.msra.mxu0 %v499
    %565 = vmatprep.subr.bf16.mxu0 %v502
    %566 = vmatpush1.bf16.msra.mxu0 %v501
    %567 = vmatprep.subr.bf16.mxu0 %v504
    %568 = vmatpush1.bf16.msra.mxu0 %v503
    %569 = vmatprep.subr.bf16.mxu0 %v506
    %570 = vmatpush1.bf16.msra.mxu0 %v505
    %571 = vmatprep.subr.bf16.mxu0 %v508
    %572 = vmatpush1.bf16.msra.mxu0 %v507
    %573 = vmatprep.subr.bf16.mxu0 %v510
    %574 = vmatpush1.bf16.msra.mxu0 %v509
    %575 = vmatprep.subr.bf16.mxu0 %v512
    %576 = vmatpush1.bf16.msra.mxu0 %v511
    %577 = vmatprep.subr.bf16.mxu0 %v514
    %578 = vmatpush1.bf16.msra.mxu0 %v513
    %579 = vmatprep.subr.bf16.mxu0 %v516
    %580 = vmatpush1.bf16.msra.mxu0 %v515
    %581 = vmatprep.subr.bf16.mxu0 %v518
    %582 = vmatpush1.bf16.msra.mxu0 %v517
    %583 = vmatprep.subr.bf16.mxu0 %v520
    %584 = vmatpush1.bf16.msra.mxu0 %v519
    %585 = vmatprep.mubr.bf16.mxu0 %v360
    %586 = vmatmul.mubr.bf16.gmra.mrb[0].mxu0 %v359
    %v587 = vpop.f32.mrb[0].mxu0
    %v588 = vadd.f32 0.0, %v587
    %v589 = vpop.f32.mrb[0].mxu0
    %v590 = vadd.f32 0.0, %v589
    %v591 = vpop.f32.mrb[0].mxu0
    %v592 = vpop.f32.mrb[0].mxu0
    %593 = vdwg.mxu0
    %v594 = vrcp.pop %v588
    %v595 = vrcp.pop %v590
    %v596 = vmul.f32 %v356, %v594
    %v597 = vmul.f32 %v358, %v595
    %598 = vst [vmem:[#allocation10] sm:$0xff] %v596
    %599 = vst [vmem:[#allocation10 + $0x8] sm:$0xff] %v597
    // Predicated region
    $region42: #{tpu_custom_call.1} parent=1 // pred_check
      _
    $region43: #{tpu_custom_call.1} parent=1 // pred_check_branch
      %601 = sbr.rel (0) target = $region45
    $region44: #{tpu_custom_call.1} parent=1 // pred_region
      %s603 = ssub.s32 256, 256
      %604 = vsyncadd [#allocation4], %s603
      %s606 = sshll.u32 [#allocation10], 4
      %s607 = int_to_ptr.vmem [resolvable:$true] %s606
      %609 = dma.vmem_to_hbm [thread:$0]  %s607, 256, %s6, [#allocation4]
    $region45: #{tpu_custom_call.1} parent=1 // pred_fallthru
      _
    // Predicated region
    $region46: #{tpu_custom_call.1} parent=1 // pred_check
      _
    $region47: #{tpu_custom_call.1} parent=1 // pred_check_branch
      %611 = sbr.rel (0) target = $region49
    $region48: #{tpu_custom_call.1} parent=1 // pred_region
      %612 = dma.done [#allocation4], 256
    $region49: #{tpu_custom_call.1} parent=1 // pred_fallthru
      _
    %613 = vsyncpa [#allocation3], 1
    %614 = vsyncpa [#allocation6], 1
    %615 = vsyncpa [#allocation9], 1
    %616 = vsyncpa [#allocation4], 1

</llo_original>
